<compile_context>
chip_gen: v7x
topology: tpu7x:2x2x1
jax: 0.10.0
libtpu: 0.0.40
codegen_flags: <defaults>
</compile_context>

<pallas_src>
import functools

import jax
import jax.numpy as jnp
from jax.experimental import pallas as pl
from jax.experimental.pallas import tpu as pltpu


_NUM_CORES = 2      # leading "parallel" axis for pass 1 (v7x megacore; harmless on 1 TC)
_LANE = 128
_SUBLANE = 8


def _round_up(x, m):
    return ((x + m - 1) // m) * m


def _vmem_capacity_bytes():
    try:
        return int(pltpu.get_tpu_info().vmem_capacity_bytes)
    except Exception:
        return 64 << 20     # conservative (v7x-sized) fallback


def _conv_stats_kernel(patches_ref, w_ref, y_ref, psum_ref, psumsq_ref, *,
                       m_valid: int, tm: int, tiles_per_core: int):
    """Pass 1: conv tile (bf16 matmul, f32 acc) + per-core channel sum / sumsq."""
    c = pl.program_id(0)
    i = pl.program_id(1)

    @pl.when(i == 0)
    def _():
        psum_ref[...] = jnp.zeros_like(psum_ref)
        psumsq_ref[...] = jnp.zeros_like(psumsq_ref)

    # Conv2d tile as one MXU matmul: bf16 operands, f32 accumulation. No bias:
    # it cancels under BN and is otherwise folded into pass 2's shift.
    y = jnp.dot(patches_ref[...], w_ref[...], preferred_element_type=jnp.float32)
    y_ref[...] = y.astype(y_ref.dtype)           # bf16 intermediate (stats use f32 y)

    t = c * tiles_per_core + i                   # global M-tile index
    rows_end = (t + 1) * tm

    # Fast path: tile fully inside the valid M rows -> unmasked reduction.
    @pl.when(rows_end <= m_valid)
    def _():
        psum_ref[...] += jnp.sum(y, axis=0, keepdims=True)
        psumsq_ref[...] += jnp.sum(y * y, axis=0, keepdims=True)

    # Slow path: only tiles containing the zero-padded M tail pay for the mask.
    @pl.when(rows_end > m_valid)
    def _():
        row = t * tm + jax.lax.broadcasted_iota(jnp.int32, y.shape, 0)
        ym = jnp.where(row < m_valid, y, 0.0)
        psum_ref[...] += jnp.sum(ym, axis=0, keepdims=True)
        psumsq_ref[...] += jnp.sum(ym * ym, axis=0, keepdims=True)


def _scale_shift_nchw_kernel(y_ref, scale_ref, shift_ref, out_ref):
    """Pass 2 (transpose-folding variant): (TSP, Cp) bf16 -> (1, Cout, TSP) f32."""
    y = y_ref[...].astype(jnp.float32) * scale_ref[...] + shift_ref[...]
    yt = jnp.transpose(y, (1, 0))                # (Cout_pad, TSP); XLU transpose
    out_ref[...] = yt[None, :out_ref.shape[1], :]


def _scale_shift_rows_kernel(y_ref, scale_ref, shift_ref, out_ref):
    """Pass 2 (row-major fallback): y * scale + shift, f32 out."""
    out_ref[...] = y_ref[...].astype(jnp.float32) * scale_ref[...] + shift_ref[...]


def _conv_block_forward(x, w, b, gamma, beta, *, kernel_size=4, stride=2,
                        padding=1, activation=True, batch_norm=True, eps=1e-5):
    """x: [N, Cin, H, W] (NCHW). w: [Cout, Cin, K, K]. Returns [N, Cout, Ho, Wo]."""
    N, Cin, H, W = x.shape
    Cout = w.shape[0]
    K = kernel_size
    Ho = (H + 2 * padding - K) // stride + 1
    Wo = (W + 2 * padding - K) // stride + 1
    HoWo = Ho * Wo
    M = N * HoWo
    Kdim = Cin * K * K
    Kdim_pad = _round_up(Kdim, _LANE)           # full-vreg contraction dim
    Cout_pad = _round_up(Cout, _LANE)           # lane-dense conv output

    x = x.astype(jnp.float32)
    if activation:
        # LeakyReLU(0.2): maps 0 -> 0, so it commutes with zero padding / patch
        # extraction and is applied once to x (not 4x on duplicated patches).
        x = jnp.where(x >= 0, x, 0.2 * x)
    xb = x.astype(jnp.bfloat16)                 # im2col materializes in bf16

    # TODO(synk): fuse im2col into pass 1 (DMA shifted strided windows of padded
    # NHWC x per tile) to remove this ~K*K/stride^2-duplicated HBM intermediate.
    xp = jnp.pad(xb, ((0, 0), (0, 0), (padding, padding), (padding, padding)))
    cols = []
    for ki in range(K):
        for kj in range(K):
            cols.append(xp[:, :, ki:ki + stride * Ho:stride,
                           kj:kj + stride * Wo:stride])
    patches = jnp.stack(cols, axis=0)                        # [K*K, N, Cin, Ho, Wo]
    patches = jnp.transpose(patches, (1, 3, 4, 2, 0)).reshape(M, Kdim)

    # --- pass-1 tile size: generation-aware VMEM budget including the resident,
    # double-buffered weight tile. -----------------------------------------------
    vmem_cap = _vmem_capacity_bytes()
    tile_budget = min(40 << 20, max(8 << 20, vmem_cap // 3))

    def pass1_vmem(tm):
        return (2 * tm * Kdim_pad * 2               # patches tiles (bf16, 2 bufs)
                + 2 * tm * Cout_pad * 2             # y tiles (bf16, 2 bufs)
                + 2 * Kdim_pad * Cout_pad * 2       # resident weights (2 bufs)
                + 4 * _NUM_CORES * _SUBLANE * Cout_pad * 4)   # stats rows

    TM = 1024
    while TM > 64 and pass1_vmem(TM) > tile_budget:
        TM //= 2
    if M < TM:
        TM = max(_SUBLANE, _round_up(M, _SUBLANE))
    M_pad = _round_up(M, _NUM_CORES * TM)
    tiles_per_core = M_pad // (_NUM_CORES * TM)

    patches = jnp.pad(patches, ((0, M_pad - M), (0, Kdim_pad - Kdim)))
    w_mat = jnp.pad(w.reshape(Cout, Kdim).T.astype(jnp.bfloat16),
                    ((0, Kdim_pad - Kdim), (0, Cout_pad - Cout)))

    vmem_limit = int(min(vmem_cap * 3 // 4,
                         max(pass1_vmem(TM) + (4 << 20), 16 << 20)))

    cost = pl.CostEstimate(
        flops=2 * M_pad * Kdim_pad * Cout_pad,
        transcendentals=0,
        bytes_accessed=(M_pad * Kdim_pad * 2 + Kdim_pad * Cout_pad * 2
                        + M_pad * Cout_pad * 2))

    y_bf16, psum, psumsq = pl.pallas_call(
        functools.partial(_conv_stats_kernel, m_valid=M, tm=TM,
                          tiles_per_core=tiles_per_core),
        out_shape=(
            jax.ShapeDtypeStruct((M_pad, Cout_pad), jnp.bfloat16),
            jax.ShapeDtypeStruct((_NUM_CORES, _SUBLANE, Cout_pad), jnp.float32),
            jax.ShapeDtypeStruct((_NUM_CORES, _SUBLANE, Cout_pad), jnp.float32),
        ),
        grid_spec=pltpu.PrefetchScalarGridSpec(
            num_scalar_prefetch=0,
            grid=(_NUM_CORES, tiles_per_core),
            in_specs=[
                pl.BlockSpec((TM, Kdim_pad),
                             lambda c, i: (c * tiles_per_core + i, 0)),
                pl.BlockSpec((Kdim_pad, Cout_pad), lambda c, i: (0, 0)),
            ],
            out_specs=[
                pl.BlockSpec((TM, Cout_pad),
                             lambda c, i: (c * tiles_per_core + i, 0)),
                pl.BlockSpec((1, _SUBLANE, Cout_pad), lambda c, i: (c, 0, 0)),
                pl.BlockSpec((1, _SUBLANE, Cout_pad), lambda c, i: (c, 0, 0)),
            ],
        ),
        compiler_params=pltpu.CompilerParams(
            dimension_semantics=("parallel", "arbitrary"),
            vmem_limit_bytes=vmem_limit),
        cost_estimate=cost,
    )(patches, w_mat)

    # ---- fold mean/var/gamma/beta (or just the conv bias) into scale & shift ----
    if batch_norm:
        psum_tot = psum[:, 0, :].sum(axis=0)       # rows within a core block repeat
        psumsq_tot = psumsq[:, 0, :].sum(axis=0)
        mean = psum_tot / M
        # E[y^2]-E[y]^2 in f32; with the conv bias excluded from y, |mean| stays
        # small and the cancellation is benign at these scales.
        var = jnp.maximum(psumsq_tot / M - mean * mean, 0.0)
        gamma_row = jnp.pad(gamma.astype(jnp.float32), (0, Cout_pad - Cout))
        beta_row = jnp.pad(beta.astype(jnp.float32), (0, Cout_pad - Cout))
        scale = gamma_row * jax.lax.rsqrt(var + eps)
        shift = beta_row - mean * scale
    else:
        scale = jnp.ones((Cout_pad,), jnp.float32)
        shift = jnp.pad(b.astype(jnp.float32), (0, Cout_pad - Cout))
    scale = scale.reshape(1, Cout_pad)
    shift = shift.reshape(1, Cout_pad)

    vmem_limit2 = int(min(vmem_cap * 3 // 4, 32 << 20))

    if HoWo % _LANE == 0:
        # Pass 2 writes NCHW directly: the per-tile (TSP, Cout_pad) -> (Cout, TSP)
        # transpose is folded into the store, removing the trailing XLA transpose.
        TSP = _LANE
        while TSP * 2 <= 2048 and HoWo % (TSP * 2) == 0:
            TSP *= 2
        spb = HoWo // TSP                          # spatial blocks per image
        out3 = pl.pallas_call(
            _scale_shift_nchw_kernel,
            out_shape=jax.ShapeDtypeStruct((N, Cout, HoWo), jnp.float32),
            grid_spec=pltpu.PrefetchScalarGridSpec(
                num_scalar_prefetch=0,
                grid=(N, spb),
                in_specs=[
                    pl.BlockSpec((TSP, Cout_pad), lambda n, s: (n * spb + s, 0)),
                    pl.BlockSpec((1, Cout_pad), lambda n, s: (0, 0)),
                    pl.BlockSpec((1, Cout_pad), lambda n, s: (0, 0)),
                ],
                out_specs=pl.BlockSpec((1, Cout, TSP), lambda n, s: (n, 0, s)),
            ),
            compiler_params=pltpu.CompilerParams(
                dimension_semantics=("parallel", "parallel"),
                vmem_limit_bytes=vmem_limit2),
        )(y_bf16, scale, shift)
        return out3.reshape(N, Cout, Ho, Wo)

    # Fallback (small / ragged spatial): row-major scale/shift with a large
    # streaming tile; the NCHW transpose is done by XLA afterwards.
    TM2 = _SUBLANE
    while TM2 * 2 <= min(M_pad, 4096) and M_pad % (TM2 * 2) == 0:
        TM2 *= 2
    y_f32 = pl.pallas_call(
        _scale_shift_rows_kernel,
        out_shape=jax.ShapeDtypeStruct((M_pad, Cout_pad), jnp.float32),
        grid_spec=pltpu.PrefetchScalarGridSpec(
            num_scalar_prefetch=0,
            grid=(M_pad // TM2,),
            in_specs=[
                pl.BlockSpec((TM2, Cout_pad), lambda i: (i, 0)),
                pl.BlockSpec((1, Cout_pad), lambda i: (0, 0)),
                pl.BlockSpec((1, Cout_pad), lambda i: (0, 0)),
            ],
            out_specs=pl.BlockSpec((TM2, Cout_pad), lambda i: (i, 0)),
        ),
        compiler_params=pltpu.CompilerParams(
            dimension_semantics=("parallel",),
            vmem_limit_bytes=vmem_limit2),
    )(y_bf16, scale, shift)
    return y_f32[:M, :Cout].reshape(N, Ho, Wo, Cout).transpose(0, 3, 1, 2)


conv_block_forward = jax.jit(
    _conv_block_forward,
    static_argnames=("kernel_size", "stride", "padding", "activation",
                     "batch_norm", "eps"))


def _reference(x, w, b, gamma, beta, *, activation=True, batch_norm=True,
               eps=1e-5):
    if activation:
        x = jnp.where(x >= 0, x, 0.2 * x)
    y = jax.lax.conv_general_dilated(
        x, w, window_strides=(2, 2), padding=((1, 1), (1, 1)),
        dimension_numbers=('NCHW', 'OIHW', 'NCHW')) + b[None, :, None, None]
    if not batch_norm:
        return y
    mean = y.mean(axis=(0, 2, 3), keepdims=True)
    var = ((y - mean) ** 2).mean(axis=(0, 2, 3), keepdims=True)
    return ((y - mean) / jnp.sqrt(var + eps) * gamma[None, :, None, None]
            + beta[None, :, None, None])


if __name__ == "__main__":
    key = jax.random.PRNGKey(0)
    k_x, k_w, k_b, k_x2 = jax.random.split(key, 4)

    Cin, Cout, K = 4, 8, 4
    w = 0.05 * jax.random.normal(k_w, (Cout, Cin, K, K), dtype=jnp.float32)
    b = 0.1 * jax.random.normal(k_b, (Cout,), dtype=jnp.float32)
    gamma = 1.0 + 0.1 * jnp.arange(Cout, dtype=jnp.float32)
    beta = 0.05 * jnp.arange(Cout, dtype=jnp.float32)

    # Case 1: 16x16 input (exercises the row-major pass-2 fallback path).
    x1 = jax.random.normal(k_x, (2, Cin, 16, 16), dtype=jnp.float32)
    out1 = jax.block_until_ready(conv_block_forward(x1, w, b, gamma, beta))
    ref1 = _reference(x1, w, b, gamma, beta)
    assert out1.shape == (2, Cout, 8, 8), out1.shape
    # bf16 matmul operands and bf16 y intermediate -> loose tolerance vs f32 ref.
    assert jnp.allclose(out1, ref1, atol=5e-2, rtol=5e-2), \
        float(jnp.max(jnp.abs(out1 - ref1)))

    # Case 2: 32x32 input (Ho*Wo % 128 == 0 -> NCHW-transpose-folding pass 2).
    x2 = jax.random.normal(k_x2, (2, Cin, 32, 32), dtype=jnp.float32)
    out2 = jax.block_until_ready(conv_block_forward(x2, w, b, gamma, beta))
    ref2 = _reference(x2, w, b, gamma, beta)
    assert out2.shape == (2, Cout, 16, 16), out2.shape
    assert jnp.allclose(out2, ref2, atol=5e-2, rtol=5e-2), \
        float(jnp.max(jnp.abs(out2 - ref2)))

    # Case 3: batch_norm=False (conv bias applied via pass 2's shift).
    out3 = jax.block_until_ready(
        conv_block_forward(x1, w, b, gamma, beta, batch_norm=False))
    ref3 = _reference(x1, w, b, gamma, beta, batch_norm=False)
    assert out3.shape == (2, Cout, 8, 8), out3.shape
    assert jnp.allclose(out3, ref3, atol=5e-2, rtol=5e-2), \
        float(jnp.max(jnp.abs(out3 - ref3)))

    print("KERNEL_OK")
</pallas_src>

<mosaic_0001>
module attributes {stable_mosaic.version = 11 : i64} {
  func.func @_conv_stats_kernel(%arg0: i32, %arg1: i32, %arg2: memref<128x128xbf16, #tpu.memory_space<vmem>>, %arg3: memref<128x128xbf16, #tpu.memory_space<vmem>>, %arg4: memref<128x128xbf16, #tpu.memory_space<vmem>>, %arg5: memref<1x8x128xf32, #tpu.memory_space<vmem>>, %arg6: memref<1x8x128xf32, #tpu.memory_space<vmem>>) attributes {dimension_semantics = [#tpu.dimension_semantics<parallel>, #tpu.dimension_semantics<arbitrary>], iteration_bounds = array<i64: 2, 1>, scalar_prefetch = 0 : i64, scratch_operands = 0 : i64, tpu.core_type = #tpu.core_type<tc>, window_params = [{transform_indices = @transform_0, window_bounds = array<i64: 128, 128>}, {pipeline_mode = #tpu.pipeline_mode<synchronous>, transform_indices = @transform_1, window_bounds = array<i64: 128, 128>}, {transform_indices = @transform_2, window_bounds = array<i64: 128, 128>}, {transform_indices = @transform_3, window_bounds = array<i64: 1, 8, 128>}, {transform_indices = @transform_4, window_bounds = array<i64: 1, 8, 128>}]} {
    %c0_i32 = arith.constant 0 : i32
    %0 = arith.cmpi eq, %arg1, %c0_i32 : i32
    %1 = arith.extui %0 : i1 to i32
    %c0_i32_0 = arith.constant 0 : i32
    %2 = arith.cmpi ne, %1, %c0_i32_0 : i32
    scf.if %2 {
      %cst_11 = arith.constant 0.000000e+00 : f32
      %18 = vector.broadcast %cst_11 : f32 to vector<1x8x128xf32>
      %c0_12 = arith.constant 0 : index
      %c0_13 = arith.constant 0 : index
      %c0_14 = arith.constant 0 : index
      %19 = vector.load %arg5[%c0_12, %c0_13, %c0_14] : memref<1x8x128xf32, #tpu.memory_space<vmem>>, vector<1x8x128xf32>
      tpu.vector_store %arg5[%c0_12, %c0_13, %c0_14], %18 {strides = array<i32>} : memref<1x8x128xf32, #tpu.memory_space<vmem>>, vector<1x8x128xf32>,
      %cst_15 = arith.constant 0.000000e+00 : f32
      %20 = vector.broadcast %cst_15 : f32 to vector<1x8x128xf32>
      %c0_16 = arith.constant 0 : index
      %c0_17 = arith.constant 0 : index
      %c0_18 = arith.constant 0 : index
      %21 = vector.load %arg6[%c0_16, %c0_17, %c0_18] : memref<1x8x128xf32, #tpu.memory_space<vmem>>, vector<1x8x128xf32>
      tpu.vector_store %arg6[%c0_16, %c0_17, %c0_18], %20 {strides = array<i32>} : memref<1x8x128xf32, #tpu.memory_space<vmem>>, vector<1x8x128xf32>,
    } else {
    }
    %c0 = arith.constant 0 : index
    %c0_1 = arith.constant 0 : index
    %3 = vector.load %arg2[%c0, %c0_1] : memref<128x128xbf16, #tpu.memory_space<vmem>>, vector<128x128xbf16>
    %c0_2 = arith.constant 0 : index
    %c0_3 = arith.constant 0 : index
    %4 = vector.load %arg3[%c0_2, %c0_3] : memref<128x128xbf16, #tpu.memory_space<vmem>>, vector<128x128xbf16>
    %cst = arith.constant dense<0.000000e+00> : vector<128x128xf32>
    %5 = tpu.matmul %3, %4, %cst {dimension_numbers = #tpu.dot_dimension_numbers<[1], [0], [0], [1], [0, 0, 1, 1], [], []>} : vector<128x128xbf16>, vector<128x128xbf16>, vector<128x128xf32> -> vector<128x128xf32>
    %6 = arith.truncf %5 : vector<128x128xf32> to vector<128x128xbf16>
    %c0_4 = arith.constant 0 : index
    %c0_5 = arith.constant 0 : index
    %7 = vector.load %arg4[%c0_4, %c0_5] : memref<128x128xbf16, #tpu.memory_space<vmem>>, vector<128x128xbf16>
    tpu.vector_store %arg4[%c0_4, %c0_5], %6 {strides = array<i32>} : memref<128x128xbf16, #tpu.memory_space<vmem>>, vector<128x128xbf16>,
    %c1_i32 = arith.constant 1 : i32
    %8 = arith.muli %arg0, %c1_i32 : i32
    %9 = arith.addi %8, %arg1 : i32
    %c1_i32_6 = arith.constant 1 : i32
    %10 = arith.addi %9, %c1_i32_6 : i32
    %c128_i32 = arith.constant 128 : i32
    %11 = arith.muli %10, %c128_i32 : i32
    %c128_i32_7 = arith.constant 128 : i32
    %12 = arith.cmpi sle, %11, %c128_i32_7 : i32
    %13 = arith.extui %12 : i1 to i32
    %c0_i32_8 = arith.constant 0 : i32
    %14 = arith.cmpi ne, %13, %c0_i32_8 : i32
    scf.if %14 {
      %c0_11 = arith.constant 0 : index
      %c0_12 = arith.constant 0 : index
      %c0_13 = arith.constant 0 : index
      %18 = vector.load %arg5[%c0_11, %c0_12, %c0_13] : memref<1x8x128xf32, #tpu.memory_space<vmem>>, vector<1x8x128xf32>
      %cst_14 = arith.constant dense<0.000000e+00> : vector<128xf32>
      %19 = vector.multi_reduction <add>, %5, %cst_14 [0] : vector<128x128xf32> to vector<128xf32>
      %20 = vector.shape_cast %19 : vector<128xf32> to vector<1x128xf32>
      %21 = vector.shape_cast %20 : vector<1x128xf32> to vector<1x1x128xf32>
      %22 = vector.broadcast %21 : vector<1x1x128xf32> to vector<1x8x128xf32>
      %23 = arith.addf %18, %22 : vector<1x8x128xf32>
      %c0_15 = arith.constant 0 : index
      %c0_16 = arith.constant 0 : index
      %c0_17 = arith.constant 0 : index
      %24 = vector.load %arg5[%c0_15, %c0_16, %c0_17] : memref<1x8x128xf32, #tpu.memory_space<vmem>>, vector<1x8x128xf32>
      tpu.vector_store %arg5[%c0_15, %c0_16, %c0_17], %23 {strides = array<i32>} : memref<1x8x128xf32, #tpu.memory_space<vmem>>, vector<1x8x128xf32>,
      %c0_18 = arith.constant 0 : index
      %c0_19 = arith.constant 0 : index
      %c0_20 = arith.constant 0 : index
      %25 = vector.load %arg6[%c0_18, %c0_19, %c0_20] : memref<1x8x128xf32, #tpu.memory_space<vmem>>, vector<1x8x128xf32>
      %26 = arith.mulf %5, %5 : vector<128x128xf32>
      %cst_21 = arith.constant dense<0.000000e+00> : vector<128xf32>
      %27 = vector.multi_reduction <add>, %26, %cst_21 [0] : vector<128x128xf32> to vector<128xf32>
      %28 = vector.shape_cast %27 : vector<128xf32> to vector<1x128xf32>
      %29 = vector.shape_cast %28 : vector<1x128xf32> to vector<1x1x128xf32>
      %30 = vector.broadcast %29 : vector<1x1x128xf32> to vector<1x8x128xf32>
      %31 = arith.addf %25, %30 : vector<1x8x128xf32>
      %c0_22 = arith.constant 0 : index
      %c0_23 = arith.constant 0 : index
      %c0_24 = arith.constant 0 : index
      %32 = vector.load %arg6[%c0_22, %c0_23, %c0_24] : memref<1x8x128xf32, #tpu.memory_space<vmem>>, vector<1x8x128xf32>
      tpu.vector_store %arg6[%c0_22, %c0_23, %c0_24], %31 {strides = array<i32>} : memref<1x8x128xf32, #tpu.memory_space<vmem>>, vector<1x8x128xf32>,
    } else {
    }
    %c128_i32_9 = arith.constant 128 : i32
    %15 = arith.cmpi sgt, %11, %c128_i32_9 : i32
    %16 = arith.extui %15 : i1 to i32
    %c0_i32_10 = arith.constant 0 : i32
    %17 = arith.cmpi ne, %16, %c0_i32_10 : i32
    scf.if %17 {
      %c128_i32_11 = arith.constant 128 : i32
      %18 = arith.muli %9, %c128_i32_11 : i32
      %19 = tpu.iota {dimensions = array<i32: 0>} : vector<128x128xi32>
      %20 = vector.broadcast %18 : i32 to vector<128x128xi32>
      %21 = arith.addi %20, %19 : vector<128x128xi32>
      %c128_i32_12 = arith.constant 128 : i32
      %22 = vector.broadcast %c128_i32_12 : i32 to vector<128x128xi32>
      %23 = arith.cmpi slt, %21, %22 : vector<128x128xi32>
      %cst_13 = arith.constant 0.000000e+00 : f32
      %24 = vector.broadcast %cst_13 : f32 to vector<128x128xf32>
      %25 = arith.select %23, %5, %24 : vector<128x128xi1>, vector<128x128xf32>
      %c0_14 = arith.constant 0 : index
      %c0_15 = arith.constant 0 : index
      %c0_16 = arith.constant 0 : index
      %26 = vector.load %arg5[%c0_14, %c0_15, %c0_16] : memref<1x8x128xf32, #tpu.memory_space<vmem>>, vector<1x8x128xf32>
      %cst_17 = arith.constant dense<0.000000e+00> : vector<128xf32>
      %27 = vector.multi_reduction <add>, %25, %cst_17 [0] : vector<128x128xf32> to vector<128xf32>
      %28 = vector.shape_cast %27 : vector<128xf32> to vector<1x128xf32>
      %29 = vector.shape_cast %28 : vector<1x128xf32> to vector<1x1x128xf32>
      %30 = vector.broadcast %29 : vector<1x1x128xf32> to vector<1x8x128xf32>
      %31 = arith.addf %26, %30 : vector<1x8x128xf32>
      %c0_18 = arith.constant 0 : index
      %c0_19 = arith.constant 0 : index
      %c0_20 = arith.constant 0 : index
      %32 = vector.load %arg5[%c0_18, %c0_19, %c0_20] : memref<1x8x128xf32, #tpu.memory_space<vmem>>, vector<1x8x128xf32>
      tpu.vector_store %arg5[%c0_18, %c0_19, %c0_20], %31 {strides = array<i32>} : memref<1x8x128xf32, #tpu.memory_space<vmem>>, vector<1x8x128xf32>,
      %c0_21 = arith.constant 0 : index
      %c0_22 = arith.constant 0 : index
      %c0_23 = arith.constant 0 : index
      %33 = vector.load %arg6[%c0_21, %c0_22, %c0_23] : memref<1x8x128xf32, #tpu.memory_space<vmem>>, vector<1x8x128xf32>
      %34 = arith.mulf %25, %25 : vector<128x128xf32>
      %cst_24 = arith.constant dense<0.000000e+00> : vector<128xf32>
      %35 = vector.multi_reduction <add>, %34, %cst_24 [0] : vector<128x128xf32> to vector<128xf32>
      %36 = vector.shape_cast %35 : vector<128xf32> to vector<1x128xf32>
      %37 = vector.shape_cast %36 : vector<1x128xf32> to vector<1x1x128xf32>
      %38 = vector.broadcast %37 : vector<1x1x128xf32> to vector<1x8x128xf32>
      %39 = arith.addf %33, %38 : vector<1x8x128xf32>
      %c0_25 = arith.constant 0 : index
      %c0_26 = arith.constant 0 : index
      %c0_27 = arith.constant 0 : index
      %40 = vector.load %arg6[%c0_25, %c0_26, %c0_27] : memref<1x8x128xf32, #tpu.memory_space<vmem>>, vector<1x8x128xf32>
      tpu.vector_store %arg6[%c0_25, %c0_26, %c0_27], %39 {strides = array<i32>} : memref<1x8x128xf32, #tpu.memory_space<vmem>>, vector<1x8x128xf32>,
    } else {
    }
    return
  }
  func.func @transform_0(%arg0: i32, %arg1: i32) -> (i32, i32) {
    %c1_i32 = arith.constant 1 : i32
    %0 = arith.muli %arg0, %c1_i32 : i32
    %1 = arith.addi %0, %arg1 : i32
    %c0_i32 = arith.constant 0 : i32
    %c0_i32_0 = arith.constant 0 : i32
    return %1, %c0_i32 : i32, i32
  }
  func.func @transform_1(%arg0: i32, %arg1: i32) -> (i32, i32) {
    %c0_i32 = arith.constant 0 : i32
    %c0_i32_0 = arith.constant 0 : i32
    %c0_i32_1 = arith.constant 0 : i32
    return %c0_i32, %c0_i32_0 : i32, i32
  }
  func.func @transform_2(%arg0: i32, %arg1: i32) -> (i32, i32) {
    %c1_i32 = arith.constant 1 : i32
    %0 = arith.muli %arg0, %c1_i32 : i32
    %1 = arith.addi %0, %arg1 : i32
    %c0_i32 = arith.constant 0 : i32
    %c0_i32_0 = arith.constant 0 : i32
    return %1, %c0_i32 : i32, i32
  }
  func.func @transform_3(%arg0: i32, %arg1: i32) -> (i32, i32, i32) {
    %c0_i32 = arith.constant 0 : i32
    %c0_i32_0 = arith.constant 0 : i32
    %c0_i32_1 = arith.constant 0 : i32
    return %arg0, %c0_i32, %c0_i32_0 : i32, i32, i32
  }
  func.func @transform_4(%arg0: i32, %arg1: i32) -> (i32, i32, i32) {
    %c0_i32 = arith.constant 0 : i32
    %c0_i32_0 = arith.constant 0 : i32
    %c0_i32_1 = arith.constant 0 : i32
    return %arg0, %c0_i32, %c0_i32_0 : i32, i32, i32
  }
}

module attributes {stable_mosaic.version = 11 : i64} {
  func.func @_scale_shift_rows_kernel(%arg0: i32, %arg1: memref<256x128xbf16, #tpu.memory_space<vmem>>, %arg2: memref<1x128xf32, #tpu.memory_space<vmem>>, %arg3: memref<1x128xf32, #tpu.memory_space<vmem>>, %arg4: memref<256x128xf32, #tpu.memory_space<vmem>>) attributes {dimension_semantics = [#tpu.dimension_semantics<parallel>], iteration_bounds = array<i64: 1>, scalar_prefetch = 0 : i64, scratch_operands = 0 : i64, tpu.core_type = #tpu.core_type<tc>, window_params = [{transform_indices = @transform_0, window_bounds = array<i64: 256, 128>}, {pipeline_mode = #tpu.pipeline_mode<synchronous>, transform_indices = @transform_1, window_bounds = array<i64: 1, 128>}, {pipeline_mode = #tpu.pipeline_mode<synchronous>, transform_indices = @transform_2, window_bounds = array<i64: 1, 128>}, {transform_indices = @transform_3, window_bounds = array<i64: 256, 128>}]} {
    %c0 = arith.constant 0 : index
    %c0_0 = arith.constant 0 : index
    %0 = vector.load %arg1[%c0, %c0_0] : memref<256x128xbf16, #tpu.memory_space<vmem>>, vector<256x128xbf16>
    %1 = arith.extf %0 : vector<256x128xbf16> to vector<256x128xf32>
    %c0_1 = arith.constant 0 : index
    %c0_2 = arith.constant 0 : index
    %2 = vector.load %arg2[%c0_1, %c0_2] : memref<1x128xf32, #tpu.memory_space<vmem>>, vector<1x128xf32>
    %3 = vector.broadcast %2 : vector<1x128xf32> to vector<256x128xf32>
    %4 = arith.mulf %1, %3 : vector<256x128xf32>
    %c0_3 = arith.constant 0 : index
    %c0_4 = arith.constant 0 : index
    %5 = vector.load %arg3[%c0_3, %c0_4] : memref<1x128xf32, #tpu.memory_space<vmem>>, vector<1x128xf32>
    %6 = vector.broadcast %5 : vector<1x128xf32> to vector<256x128xf32>
    %7 = arith.addf %4, %6 : vector<256x128xf32>
    %c0_5 = arith.constant 0 : index
    %c0_6 = arith.constant 0 : index
    %8 = vector.load %arg4[%c0_5, %c0_6] : memref<256x128xf32, #tpu.memory_space<vmem>>, vector<256x128xf32>
    tpu.vector_store %arg4[%c0_5, %c0_6], %7 {strides = array<i32>} : memref<256x128xf32, #tpu.memory_space<vmem>>, vector<256x128xf32>,
    return
  }
  func.func @transform_0(%arg0: i32) -> (i32, i32) {
    %c0_i32 = arith.constant 0 : i32
    %c0_i32_0 = arith.constant 0 : i32
    return %arg0, %c0_i32 : i32, i32
  }
  func.func @transform_1(%arg0: i32) -> (i32, i32) {
    %c0_i32 = arith.constant 0 : i32
    %c0_i32_0 = arith.constant 0 : i32
    %c0_i32_1 = arith.constant 0 : i32
    return %c0_i32, %c0_i32_0 : i32, i32
  }
  func.func @transform_2(%arg0: i32) -> (i32, i32) {
    %c0_i32 = arith.constant 0 : i32
    %c0_i32_0 = arith.constant 0 : i32
    %c0_i32_1 = arith.constant 0 : i32
    return %c0_i32, %c0_i32_0 : i32, i32
  }
  func.func @transform_3(%arg0: i32) -> (i32, i32) {
    %c0_i32 = arith.constant 0 : i32
    %c0_i32_0 = arith.constant 0 : i32
    return %arg0, %c0_i32 : i32, i32
  }
}

</mosaic_0001>

<llo_original>
// kernel: _conv_block_forward.2
$region0: #{_conv_block_forward.2}
  #allocation0 [shape = 'u32[]', space=smem, size = 0x4, offset = 0x4, fixed_abs, tag = 'smem constant byte address 0x4 - core index']
  #allocation1 [shape = 'u32[144,128]{1,0:T(1,128)}', space=vmem, size = 0x12000, scoped, tag = 'internal scratch']
  %s0 = inlined_call_operand.vmem [shape: bf16[256,128], index: 0, kind: input, shape index: {}]
  %s1 = inlined_call_operand.vmem [shape: bf16[128,128], index: 1, kind: input, shape index: {}]
  %s2 = inlined_call_operand.vmem [shape: bf16[256,128], index: 2, kind: output, shape index: {0}]
  %s3 = inlined_call_operand.vmem [shape: f32[2,8,128], index: 3, kind: output, shape index: {1}]
  %s4 = inlined_call_operand.vmem [shape: f32[2,8,128], index: 4, kind: output, shape index: {2}]
  %5 = xla_tuple %s2, %s3, %s4
  %s6 = sld [smem:[#allocation0]]
  $region69: #{_conv_block_forward.2} parent=0
    _
  %s8 = ssub.s32 1, %s6
  %s9 = scalar_select 0, %s8, %s6
  loop: start=0, step=1, limit=4
  $region2: #{_conv_block_forward.2} parent=0 // loop_pre_header
    _
  $region3: #{_conv_block_forward.2} parent=0 // loop_header
    %s11 = sphi 0, %s15
    %p12 = scmp.ge.s32.totalorder %s11, 4
    %s18 = sphi 0, %s30
    %s19 = sphi 0, %s26
    %s20 = sphi 0, %s18
    %s21 = sphi 0, %s19
    %s22 = sphi 0, %s20
    %s23 = sphi 0, %s21
    %s35 = sphi 0, %s37
    %s38 = sphi 0, %s35
    %s39 = sphi 0, %s38
    %s55 = sphi 0, %s39
    %s59 = sphi 0, %s59
    %s61 = sphi 0, %s59
    %s62 = sphi 0, %s61
    %s76 = sphi 0, %s62
    %s84 = sphi 0, %s86
    %s87 = sphi 0, %s84
    %s88 = sphi 0, %s87
    %s104 = sphi 0, %s88
    %s110 = sphi 0, %s112
    %s113 = sphi 0, %s110
    %s114 = sphi 0, %s113
    %s130 = sphi 0, %s114
    %s136 = sphi 0, %s138
    %s139 = sphi 0, %s136
    %s140 = sphi 0, %s139
    %s156 = sphi 0, %s140
  $region4: #{_conv_block_forward.2} parent=0 // loop_header_branch
    %14 = sbr.rel (%p12) target = $region8
  $region5: #{_conv_block_forward.2} parent=0 // loop_body
    %s16 = ssub.s32 %s11, 1
    %s17 = ssub.s32 %s11, 2
    %s24 = sadd.s32 1, %s19
    %p25 = scmp.ge.s32.totalorder %s24, 1
    %s26 = scalar_select %p25, 0, %s24
    %s27 = sadd.s32 1, %s18
    %s28 = scalar_select %p25, %s27, %s18
    %p29 = scmp.ge.s32.totalorder %s28, 2
    %s30 = scalar_select %p29, 0, %s28
    %s31 = sadd.s32 %s18, %s19
    %s32 = sadd.s32 %s30, %s26
    %s33 = ssub.s32 %s31, %s32
    %p34 = scmp.eq.s32.totalorder %s33, 0
    %s36 = sadd.s32 %s35, 1
    %s37 = scalar_select %p34, %s35, %s36
    %p40 = pneg %p34
    %p41 = scmp.eq.s32.totalorder %s11, 1
    %p42 = por %p40, %p41
    %p43 = scmp.ne.s32.totalorder %s35, %s38
    %p44 = scmp.eq.s32.totalorder %s11, 0
    %p45 = por %p43, %p44
    %p46 = scmp.ne.s32.totalorder %s35, %s38
    %p47 = scmp.eq.s32.totalorder %s16, 1
    %p48 = por %p46, %p47
    %p49 = scmp.ne.s32.totalorder %s38, %s39
    %p50 = scmp.eq.s32.totalorder %s16, 0
    %p51 = por %p49, %p50
    %p52 = scmp.ne.s32.totalorder %s38, %s39
    %p53 = scmp.eq.s32.totalorder %s17, 1
    %p54 = por %p52, %p53
    %p56 = scmp.ne.s32.totalorder %s39, %s55
    %p57 = scmp.eq.s32.totalorder %s17, 0
    %p58 = por %p56, %p57
    %s60 = sadd.s32 %s59, 1
    %p63 = scmp.eq.s32.totalorder %s11, 1
    %p64 = scmp.ne.s32.totalorder %s59, %s61
    %p65 = scmp.eq.s32.totalorder %s11, 0
    %p66 = por %p64, %p65
    %p67 = scmp.ne.s32.totalorder %s59, %s61
    %p68 = scmp.eq.s32.totalorder %s16, 1
    %p69 = por %p67, %p68
    %p70 = scmp.ne.s32.totalorder %s61, %s62
    %p71 = scmp.eq.s32.totalorder %s16, 0
    %p72 = por %p70, %p71
    %p73 = scmp.ne.s32.totalorder %s61, %s62
    %p74 = scmp.eq.s32.totalorder %s17, 1
    %p75 = por %p73, %p74
    %p77 = scmp.ne.s32.totalorder %s62, %s76
    %p78 = scmp.eq.s32.totalorder %s17, 0
    %p79 = por %p77, %p78
    %s80 = sadd.s32 %s18, %s19
    %s81 = sadd.s32 %s30, %s26
    %s82 = ssub.s32 %s80, %s81
    %p83 = scmp.eq.s32.totalorder %s82, 0
    %s85 = sadd.s32 %s84, 1
    %s86 = scalar_select %p83, %s84, %s85
    %p89 = pneg %p83
    %p90 = scmp.eq.s32.totalorder %s11, 1
    %p91 = por %p89, %p90
    %p92 = scmp.ne.s32.totalorder %s84, %s87
    %p93 = scmp.eq.s32.totalorder %s11, 0
    %p94 = por %p92, %p93
    %p95 = scmp.ne.s32.totalorder %s84, %s87
    %p96 = scmp.eq.s32.totalorder %s16, 1
    %p97 = por %p95, %p96
    %p98 = scmp.ne.s32.totalorder %s87, %s88
    %p99 = scmp.eq.s32.totalorder %s16, 0
    %p100 = por %p98, %p99
    %p101 = scmp.ne.s32.totalorder %s87, %s88
    %p102 = scmp.eq.s32.totalorder %s17, 1
    %p103 = por %p101, %p102
    %p105 = scmp.ne.s32.totalorder %s88, %s104
    %p106 = scmp.eq.s32.totalorder %s17, 0
    %p107 = por %p105, %p106
    %s108 = ssub.s32 %s18, %s30
    %p109 = scmp.eq.s32.totalorder %s108, 0
    %s111 = sadd.s32 %s110, 1
    %s112 = scalar_select %p109, %s110, %s111
    %p115 = pneg %p109
    %p116 = scmp.eq.s32.totalorder %s11, 1
    %p117 = por %p115, %p116
    %p118 = scmp.ne.s32.totalorder %s110, %s113
    %p119 = scmp.eq.s32.totalorder %s11, 0
    %p120 = por %p118, %p119
    %p121 = scmp.ne.s32.totalorder %s110, %s113
    %p122 = scmp.eq.s32.totalorder %s16, 1
    %p123 = por %p121, %p122
    %p124 = scmp.ne.s32.totalorder %s113, %s114
    %p125 = scmp.eq.s32.totalorder %s16, 0
    %p126 = por %p124, %p125
    %p127 = scmp.ne.s32.totalorder %s113, %s114
    %p128 = scmp.eq.s32.totalorder %s17, 1
    %p129 = por %p127, %p128
    %p131 = scmp.ne.s32.totalorder %s114, %s130
    %p132 = scmp.eq.s32.totalorder %s17, 0
    %p133 = por %p131, %p132
    %s134 = ssub.s32 %s18, %s30
    %p135 = scmp.eq.s32.totalorder %s134, 0
    %s137 = sadd.s32 %s136, 1
    %s138 = scalar_select %p135, %s136, %s137
    %p141 = pneg %p135
    %p142 = scmp.eq.s32.totalorder %s11, 1
    %p143 = por %p141, %p142
    %p144 = scmp.ne.s32.totalorder %s136, %s139
    %p145 = scmp.eq.s32.totalorder %s11, 0
    %p146 = por %p144, %p145
    %p147 = scmp.ne.s32.totalorder %s136, %s139
    %p148 = scmp.eq.s32.totalorder %s16, 1
    %p149 = por %p147, %p148
    %p150 = scmp.ne.s32.totalorder %s139, %s140
    %p151 = scmp.eq.s32.totalorder %s16, 0
    %p152 = por %p150, %p151
    %p153 = scmp.ne.s32.totalorder %s139, %s140
    %p154 = scmp.eq.s32.totalorder %s17, 1
    %p155 = por %p153, %p154
    %p157 = scmp.ne.s32.totalorder %s140, %s156
    %p158 = scmp.eq.s32.totalorder %s17, 0
    %p159 = por %p157, %p158
    %p160 = scmp.le.s32.totalorder 1, %s11
    %p161 = scmp.lt.s32.totalorder %s11, 3
    %p162 = pnand %p160, %p161
    %p163 = pneg %p162
    // Predicated region
    $region9: #{_conv_block_forward.2} parent=5 // pred_check
      _
    $region10: #{_conv_block_forward.2} parent=5 // pred_check_branch
      %165 = sbr.rel (%p162) target = $region12
    $region11: #{_conv_block_forward.2} parent=5 // pred_region
      %s166 = ssub.s32 %s11, 1
      // Predicated region
      $region13: #{_conv_block_forward.2} parent=11 // pred_check
        %p167 = pneg %p72
      $region14: #{_conv_block_forward.2} parent=11 // pred_check_branch
        %169 = sbr.rel (%p167) target = $region16
      $region15: #{_conv_block_forward.2} parent=11 // pred_region
        _
      $region16: #{_conv_block_forward.2} parent=11 // pred_fallthru
        _
    $region12: #{_conv_block_forward.2} parent=5 // pred_fallthru
      _
    %p170 = scmp.lt.s32.totalorder %s11, 2
    // Predicated region
    $region17: #{_conv_block_forward.2} parent=5 // pred_check
      %p171 = pneg %p170
    $region18: #{_conv_block_forward.2} parent=5 // pred_check_branch
      %173 = sbr.rel (%p171) target = $region20
    $region19: #{_conv_block_forward.2} parent=5 // pred_region
      // Predicated region
      $region21: #{_conv_block_forward.2} parent=19 // pred_check
        %p174 = pneg %p45
      $region22: #{_conv_block_forward.2} parent=19 // pred_check_branch
        %176 = sbr.rel (%p174) target = $region24
      $region23: #{_conv_block_forward.2} parent=19 // pred_region
        %s177 = sadd.s32 %s18, %s19
        %s178 = smul.u32 16, %s177
        %p179 = scmp.lt.s32.totalorder %s178, 31
        %s180 = scalar_select %p179, %s178, 31
        %s181 = smul.addr %s180, 4
        %s182 = scalar_lea.vmem %s0, %s181
        %s183 = sadd.s32 %s18, %s19
        %s184 = smul.u32 16, %s183
      $region24: #{_conv_block_forward.2} parent=19 // pred_fallthru
        _
    $region20: #{_conv_block_forward.2} parent=5 // pred_fallthru
      _
    %p185 = scmp.le.s32.totalorder 1, %s11
    %p186 = scmp.lt.s32.totalorder %s11, 3
    %p187 = pnand %p185, %p186
    %p188 = pneg %p187
    // Predicated region
    $region25: #{_conv_block_forward.2} parent=5 // pred_check
      _
    $region26: #{_conv_block_forward.2} parent=5 // pred_check_branch
      %190 = sbr.rel (%p187) target = $region28
    $region27: #{_conv_block_forward.2} parent=5 // pred_region
      %s191 = ssub.s32 %s11, 1
      %s192 = sadd.s32 %s20, %s21
      %s193 = smul.u32 16, %s192
      %p194 = scmp.lt.s32.totalorder %s193, 31
      %s195 = scalar_select %p194, %s193, 31
      %s196 = smul.addr %s195, 4
      %s197 = scalar_lea.vmem %s0, %s196
      %p198 = pneg %p51
      %p199 = pneg %p48
      %p200 = pneg %p72
      %p201 = pneg %p69
      %p202 = pneg %p100
      %p203 = pneg %p97
      %s204 = sadd.s32 %s20, %s21
      %s205 = smul.u32 16, %s204
      %p206 = scmp.lt.s32.totalorder %s205, 31
      %s207 = scalar_select %p206, %s205, 31
      %s208 = smul.addr %s207, 4
      %s209 = scalar_lea.vmem %s2, %s208
      %p210 = pneg %p126
      %p211 = pneg %p123
      %p212 = scmp.lt.s32.totalorder %s20, 1
      %s213 = scalar_select %p212, %s20, 1
      %s214 = smul.addr %s213, 8
      %s215 = scalar_lea.vmem %s3, %s214
      %p216 = pneg %p152
      %p217 = pneg %p149
      %p218 = scmp.lt.s32.totalorder %s20, 1
      %s219 = scalar_select %p218, %s20, 1
      %s220 = smul.addr %s219, 8
      %s221 = scalar_lea.vmem %s4, %s220
      %s222 = sadd.s32 %s20, %s21
      %s223 = smul.u32 16, %s222
      %p224 = scmp.lt.s32.totalorder %s223, 31
      %s225 = scalar_select %p224, %s223, 31
      %s226 = smul.addr %s225, 4
      %s227 = scalar_lea.vmem %s0, %s226
      %s228 = sadd.s32 %s20, %s21
      %s229 = smul.u32 16, %s228
      %s230 = sadd.s32 %s20, %s21
      %s231 = smul.u32 16, %s230
      %p232 = scmp.lt.s32.totalorder %s231, 31
      %s233 = scalar_select %p232, %s231, 31
      %s234 = smul.addr %s233, 4
      %s235 = scalar_lea.vmem %s2, %s234
      %s236 = sadd.s32 %s20, %s21
      %s237 = smul.u32 16, %s236
      %p238 = scmp.lt.s32.totalorder %s20, 1
      %s239 = scalar_select %p238, %s20, 1
      %s240 = smul.addr %s239, 8
      %s241 = scalar_lea.vmem %s3, %s240
      %p242 = scmp.lt.s32.totalorder %s20, 1
      %s243 = scalar_select %p242, %s20, 1
      %s244 = smul.addr %s243, 8
      %s245 = scalar_lea.vmem %s4, %s244
      %p247 = scmp.eq.s32.totalorder %s21, 0
      // Predicated region
      $region29: #{_conv_block_forward.2} parent=27 // pred_check
        %p248 = pneg %p247
      $region30: #{_conv_block_forward.2} parent=27 // pred_check_branch
        %250 = sbr.rel (%p248) target = $region32
      $region31: #{_conv_block_forward.2} parent=27 // pred_region
        %251 = vst [vmem:[%s241] sm:$0xff] 0.0
        %252 = vst [vmem:[%s245] sm:$0xff] 0.0
      $region32: #{_conv_block_forward.2} parent=27 // pred_fallthru
        _
      %v253 = vld [vmem:[%s227] sm:$0xf]
      %v254 = vld [vmem:[%s227 + $0x4] sm:$0xf]
      %v255 = vld [vmem:[%s227 + $0x8] sm:$0xf]
      %v256 = vld [vmem:[%s227 + $0xc] sm:$0xf]
      %v257 = vld [vmem:[%s227 + $0x10] sm:$0xf]
      %v258 = vld [vmem:[%s227 + $0x14] sm:$0xf]
      %v259 = vld [vmem:[%s227 + $0x18] sm:$0xf]
      %v260 = vld [vmem:[%s227 + $0x1c] sm:$0xf]
      %v261 = vld [vmem:[%s227 + $0x20] sm:$0xf]
      %v262 = vld [vmem:[%s227 + $0x24] sm:$0xf]
      %v263 = vld [vmem:[%s227 + $0x28] sm:$0xf]
      %v264 = vld [vmem:[%s227 + $0x2c] sm:$0xf]
      %v265 = vld [vmem:[%s227 + $0x30] sm:$0xf]
      %v266 = vld [vmem:[%s227 + $0x34] sm:$0xf]
      %v267 = vld [vmem:[%s227 + $0x38] sm:$0xf]
      %v268 = vld [vmem:[%s227 + $0x3c] sm:$0xf]
      %v269 = vld [vmem:[%s1] sm:$0xf]
      %v270 = vld [vmem:[%s1 + $0x4] sm:$0xf]
      %v271 = vld [vmem:[%s1 + $0x8] sm:$0xf]
      %v272 = vld [vmem:[%s1 + $0xc] sm:$0xf]
      %v273 = vld [vmem:[%s1 + $0x10] sm:$0xf]
      %v274 = vld [vmem:[%s1 + $0x14] sm:$0xf]
      %v275 = vld [vmem:[%s1 + $0x18] sm:$0xf]
      %v276 = vld [vmem:[%s1 + $0x1c] sm:$0xf]
      %v277 = vld [vmem:[%s1 + $0x20] sm:$0xf]
      %v278 = vld [vmem:[%s1 + $0x24] sm:$0xf]
      %v279 = vld [vmem:[%s1 + $0x28] sm:$0xf]
      %v280 = vld [vmem:[%s1 + $0x2c] sm:$0xf]
      %v281 = vld [vmem:[%s1 + $0x30] sm:$0xf]
      %v282 = vld [vmem:[%s1 + $0x34] sm:$0xf]
      %v283 = vld [vmem:[%s1 + $0x38] sm:$0xf]
      %v284 = vld [vmem:[%s1 + $0x3c] sm:$0xf]
      %v301 = vunpack.c.l.b16 %v253
      %v302 = vunpack.c.l.b16 %v254
      %v303 = vunpack.c.l.b16 %v255
      %v304 = vunpack.c.l.b16 %v256
      %v305 = vunpack.c.l.b16 %v257
      %v306 = vunpack.c.l.b16 %v258
      %v307 = vunpack.c.l.b16 %v259
      %v308 = vunpack.c.l.b16 %v260
      %v309 = vunpack.c.l.b16 %v261
      %v310 = vunpack.c.l.b16 %v262
      %v311 = vunpack.c.l.b16 %v263
      %v312 = vunpack.c.l.b16 %v264
      %v313 = vunpack.c.l.b16 %v265
      %v314 = vunpack.c.l.b16 %v266
      %v315 = vunpack.c.l.b16 %v267
      %v316 = vunpack.c.l.b16 %v268
      %v317 = vpack.c.b16 %v302, %v301
      %v318 = vpack.c.b16 %v304, %v303
      %v319 = vpack.c.b16 %v306, %v305
      %v320 = vpack.c.b16 %v308, %v307
      %v321 = vpack.c.b16 %v310, %v309
      %v322 = vpack.c.b16 %v312, %v311
      %v323 = vpack.c.b16 %v314, %v313
      %v324 = vpack.c.b16 %v316, %v315
      %v349 = vunpack.c.l.b16 %v269
      %v350 = vunpack.c.l.b16 %v270
      %v351 = vunpack.c.l.b16 %v271
      %v352 = vunpack.c.l.b16 %v272
      %v353 = vunpack.c.l.b16 %v273
      %v354 = vunpack.c.l.b16 %v274
      %v355 = vunpack.c.l.b16 %v275
      %v356 = vunpack.c.l.b16 %v276
      %v357 = vunpack.c.l.b16 %v277
      %v358 = vunpack.c.l.b16 %v278
      %v359 = vunpack.c.l.b16 %v279
      %v360 = vunpack.c.l.b16 %v280
      %v361 = vunpack.c.l.b16 %v281
      %v362 = vunpack.c.l.b16 %v282
      %v363 = vunpack.c.l.b16 %v283
      %v364 = vunpack.c.l.b16 %v284
      %v365 = vpack.c.b16 %v350, %v349
      %v366 = vpack.c.b16 %v352, %v351
      %v367 = vpack.c.b16 %v354, %v353
      %v368 = vpack.c.b16 %v356, %v355
      %v369 = vpack.c.b16 %v358, %v357
      %v370 = vpack.c.b16 %v360, %v359
      %v371 = vpack.c.b16 %v362, %v361
      %v372 = vpack.c.b16 %v364, %v363
      %381 = vmatprep.subr.bf16.mxu0 0
      %382 = vmatpush1.bf16.msra.mxu0 %v365
      %383 = vmatprep.subr.bf16.mxu0 0
      %384 = vmatpush1.bf16.msra.mxu0 %v366
      %385 = vmatprep.subr.bf16.mxu0 0
      %386 = vmatpush1.bf16.msra.mxu0 %v367
      %387 = vmatprep.subr.bf16.mxu0 0
      %388 = vmatpush1.bf16.msra.mxu0 %v368
      %389 = vmatprep.subr.bf16.mxu0 0
      %390 = vmatpush1.bf16.msra.mxu0 %v369
      %391 = vmatprep.subr.bf16.mxu0 0
      %392 = vmatpush1.bf16.msra.mxu0 %v370
      %393 = vmatprep.subr.bf16.mxu0 0
      %394 = vmatpush1.bf16.msra.mxu0 %v371
      %395 = vmatprep.subr.bf16.mxu0 0
      %396 = vmatpush1.bf16.msra.mxu0 %v372
      %397 = vmatprep.subr.bf16.mxu0 0
      %398 = vmatpush1.bf16.msra.mxu0 0
      %399 = vmatprep.subr.bf16.mxu0 0
      %400 = vmatpush1.bf16.msra.mxu0 0
      %401 = vmatprep.subr.bf16.mxu0 0
      %402 = vmatpush1.bf16.msra.mxu0 0
      %403 = vmatprep.subr.bf16.mxu0 0
      %404 = vmatpush1.bf16.msra.mxu0 0
      %405 = vmatprep.subr.bf16.mxu0 0
      %406 = vmatpush1.bf16.msra.mxu0 0
      %407 = vmatprep.subr.bf16.mxu0 0
      %408 = vmatpush1.bf16.msra.mxu0 0
      %409 = vmatprep.subr.bf16.mxu0 0
      %410 = vmatpush1.bf16.msra.mxu0 0
      %411 = vmatprep.subr.bf16.mxu0 0
      %412 = vmatpush1.bf16.msra.mxu0 0
      %413 = vmatprep.mubr.bf16.mxu0 0
      %414 = vmatmul.mubr.bf16.gmra.mrb[0].mxu0 %v317
      %v415 = vpop.f32.mrb[0].mxu0
      %v416 = vadd.f32 0.0, %v415
      %v417 = vpop.f32.mrb[0].mxu0
      %v418 = vpop.f32.mrb[0].mxu0
      %v419 = vadd.f32 0.0, %v418
      %v420 = vpop.f32.mrb[0].mxu0
      %421 = vmatprep.mubr.bf16.mxu0 0
      %422 = vmatmul.mubr.bf16.gmra.mrb[0].mxu0 %v318
      %v423 = vpop.f32.mrb[0].mxu0
      %v424 = vadd.f32 0.0, %v423
      %v425 = vpop.f32.mrb[0].mxu0
      %v426 = vpop.f32.mrb[0].mxu0
      %v427 = vadd.f32 0.0, %v426
      %v428 = vpop.f32.mrb[0].mxu0
      %429 = vmatprep.mubr.bf16.mxu0 0
      %430 = vmatmul.mubr.bf16.gmra.mrb[0].mxu0 %v319
      %v431 = vpop.f32.mrb[0].mxu0
      %v432 = vadd.f32 0.0, %v431
      %v433 = vpop.f32.mrb[0].mxu0
      %v434 = vpop.f32.mrb[0].mxu0
      %v435 = vadd.f32 0.0, %v434
      %v436 = vpop.f32.mrb[0].mxu0
      %437 = vmatprep.mubr.bf16.mxu0 0
      %438 = vmatmul.mubr.bf16.gmra.mrb[0].mxu0 %v320
      %v439 = vpop.f32.mrb[0].mxu0
      %v440 = vadd.f32 0.0, %v439
      %v441 = vpop.f32.mrb[0].mxu0
      %v442 = vpop.f32.mrb[0].mxu0
      %v443 = vadd.f32 0.0, %v442
      %v444 = vpop.f32.mrb[0].mxu0
      %445 = vmatprep.mubr.bf16.mxu0 0
      %446 = vmatmul.mubr.bf16.gmra.mrb[0].mxu0 %v321
      %v447 = vpop.f32.mrb[0].mxu0
      %v448 = vadd.f32 0.0, %v447
      %v449 = vpop.f32.mrb[0].mxu0
      %v450 = vpop.f32.mrb[0].mxu0
      %v451 = vadd.f32 0.0, %v450
      %v452 = vpop.f32.mrb[0].mxu0
      %453 = vmatprep.mubr.bf16.mxu0 0
      %454 = vmatmul.mubr.bf16.gmra.mrb[0].mxu0 %v322
      %v455 = vpop.f32.mrb[0].mxu0
      %v456 = vadd.f32 0.0, %v455
      %v457 = vpop.f32.mrb[0].mxu0
      %v458 = vpop.f32.mrb[0].mxu0
      %v459 = vadd.f32 0.0, %v458
      %v460 = vpop.f32.mrb[0].mxu0
      %461 = vmatprep.mubr.bf16.mxu0 0
      %462 = vmatmul.mubr.bf16.gmra.mrb[0].mxu0 %v323
      %v463 = vpop.f32.mrb[0].mxu0
      %v464 = vadd.f32 0.0, %v463
      %v465 = vpop.f32.mrb[0].mxu0
      %v466 = vpop.f32.mrb[0].mxu0
      %v467 = vadd.f32 0.0, %v466
      %v468 = vpop.f32.mrb[0].mxu0
      %469 = vmatprep.mubr.bf16.mxu0 0
      %470 = vmatmul.mubr.bf16.gmra.mrb[0].mxu0 %v324
      %v471 = vpop.f32.mrb[0].mxu0
      %v472 = vadd.f32 0.0, %v471
      %v473 = vpop.f32.mrb[0].mxu0
      %v474 = vpop.f32.mrb[0].mxu0
      %v475 = vadd.f32 0.0, %v474
      %v476 = vpop.f32.mrb[0].mxu0
      %477 = vdwg.mxu0
      %v478 = vpack.c.bf16 %v419, %v416
      %v479 = vpack.c.bf16 %v427, %v424
      %v480 = vpack.c.bf16 %v435, %v432
      %v481 = vpack.c.bf16 %v443, %v440
      %v482 = vpack.c.bf16 %v451, %v448
      %v483 = vpack.c.bf16 %v459, %v456
      %v484 = vpack.c.bf16 %v467, %v464
      %v485 = vpack.c.bf16 %v475, %v472
      %v494 = vunpack.c.l.b16 %v478
      %v495 = vunpack.c.h.b16 %v478
      %v496 = vunpack.c.l.b16 %v479
      %v497 = vunpack.c.h.b16 %v479
      %v498 = vunpack.c.l.b16 %v480
      %v499 = vunpack.c.h.b16 %v480
      %v500 = vunpack.c.l.b16 %v481
      %v501 = vunpack.c.h.b16 %v481
      %v502 = vunpack.c.l.b16 %v482
      %v503 = vunpack.c.h.b16 %v482
      %v504 = vunpack.c.l.b16 %v483
      %v505 = vunpack.c.h.b16 %v483
      %v506 = vunpack.c.l.b16 %v484
      %v507 = vunpack.c.h.b16 %v484
      %v508 = vunpack.c.l.b16 %v485
      %v509 = vunpack.c.h.b16 %v485
      %v510 = vpack.c.b16 %v494, %v494
      %v511 = vpack.c.b16 %v495, %v495
      %v512 = vpack.c.b16 %v496, %v496
      %v513 = vpack.c.b16 %v497, %v497
      %v514 = vpack.c.b16 %v498, %v498
      %v515 = vpack.c.b16 %v499, %v499
      %v516 = vpack.c.b16 %v500, %v500
      %v517 = vpack.c.b16 %v501, %v501
      %v518 = vpack.c.b16 %v502, %v502
      %v519 = vpack.c.b16 %v503, %v503
      %v520 = vpack.c.b16 %v504, %v504
      %v521 = vpack.c.b16 %v505, %v505
      %v522 = vpack.c.b16 %v506, %v506
      %v523 = vpack.c.b16 %v507, %v507
      %v524 = vpack.c.b16 %v508, %v508
      %v525 = vpack.c.b16 %v509, %v509
      %542 = vst [vmem:[%s235] sm:$0xf] %v510
      %543 = vst [vmem:[%s235 + $0x4] sm:$0xf] %v511
      %544 = vst [vmem:[%s235 + $0x8] sm:$0xf] %v512
      %545 = vst [vmem:[%s235 + $0xc] sm:$0xf] %v513
      %546 = vst [vmem:[%s235 + $0x10] sm:$0xf] %v514
      %547 = vst [vmem:[%s235 + $0x14] sm:$0xf] %v515
      %548 = vst [vmem:[%s235 + $0x18] sm:$0xf] %v516
      %549 = vst [vmem:[%s235 + $0x1c] sm:$0xf] %v517
      %550 = vst [vmem:[%s235 + $0x20] sm:$0xf] %v518
      %551 = vst [vmem:[%s235 + $0x24] sm:$0xf] %v519
      %552 = vst [vmem:[%s235 + $0x28] sm:$0xf] %v520
      %553 = vst [vmem:[%s235 + $0x2c] sm:$0xf] %v521
      %554 = vst [vmem:[%s235 + $0x30] sm:$0xf] %v522
      %555 = vst [vmem:[%s235 + $0x34] sm:$0xf] %v523
      %556 = vst [vmem:[%s235 + $0x38] sm:$0xf] %v524
      %557 = vst [vmem:[%s235 + $0x3c] sm:$0xf] %v525
      %s558 = sadd.s32 %s20, %s21
      %s559 = sadd.s32 %s558, 1
      %s560 = smul.u32 %s559, 128
      %p561 = scmp.le.s32.totalorder %s560, 128
      // Predicated region
      $region33: #{_conv_block_forward.2} parent=27 // pred_check
        %p562 = pneg %p561
      $region34: #{_conv_block_forward.2} parent=27 // pred_check_branch
        %564 = sbr.rel (%p562) target = $region36
      $region35: #{_conv_block_forward.2} parent=27 // pred_region
        %v565 = vld [vmem:[%s241] sm:$0xff]
        %v566 = vadd.f32 %v416, %v419
        %v567 = vadd.f32 %v566, %v424
        %v568 = vadd.f32 %v567, %v427
        %v569 = vadd.f32 %v568, %v432
        %v570 = vadd.f32 %v569, %v435
        %v571 = vadd.f32 %v570, %v440
        %v572 = vadd.f32 %v571, %v443
        %v573 = vadd.f32 %v572, %v448
        %v574 = vadd.f32 %v573, %v451
        %v575 = vadd.f32 %v574, %v456
        %v576 = vadd.f32 %v575, %v459
        %v577 = vadd.f32 %v576, %v464
        %v578 = vadd.f32 %v577, %v467
        %v579 = vadd.f32 %v578, %v472
        %v580 = vadd.f32 %v579, %v475
        %v581 = vrot.slane %v580, 4
        %v582 = vadd.f32 %v580, %v581
        %v583 = vrot.slane %v582, 2
        %v584 = vadd.f32 %v582, %v583
        %v585 = vrot.slane %v584, 1
        %v586 = vadd.f32 %v584, %v585
        %v587 = vadd.f32 %v565, %v586
        %588 = vst [vmem:[%s241] sm:$0xff] %v587
        %v589 = vld [vmem:[%s245] sm:$0xff]
        %v590 = vmul.f32 %v416, %v416
        %v591 = vmul.f32 %v419, %v419
        %v592 = vmul.f32 %v424, %v424
        %v593 = vmul.f32 %v427, %v427
        %v594 = vmul.f32 %v432, %v432
        %v595 = vmul.f32 %v435, %v435
        %v596 = vmul.f32 %v440, %v440
        %v597 = vmul.f32 %v443, %v443
        %v598 = vmul.f32 %v448, %v448
        %v599 = vmul.f32 %v451, %v451
        %v600 = vmul.f32 %v456, %v456
        %v601 = vmul.f32 %v459, %v459
        %v602 = vmul.f32 %v464, %v464
        %v603 = vmul.f32 %v467, %v467
        %v604 = vmul.f32 %v472, %v472
        %v605 = vmul.f32 %v475, %v475
        %v606 = vadd.f32 %v590, %v591
        %v607 = vadd.f32 %v606, %v592
        %v608 = vadd.f32 %v607, %v593
        %v609 = vadd.f32 %v608, %v594
        %v610 = vadd.f32 %v609, %v595
        %v611 = vadd.f32 %v610, %v596
        %v612 = vadd.f32 %v611, %v597
        %v613 = vadd.f32 %v612, %v598
        %v614 = vadd.f32 %v613, %v599
        %v615 = vadd.f32 %v614, %v600
        %v616 = vadd.f32 %v615, %v601
        %v617 = vadd.f32 %v616, %v602
        %v618 = vadd.f32 %v617, %v603
        %v619 = vadd.f32 %v618, %v604
        %v620 = vadd.f32 %v619, %v605
        %v621 = vrot.slane %v620, 4
        %v622 = vadd.f32 %v620, %v621
        %v623 = vrot.slane %v622, 2
        %v624 = vadd.f32 %v622, %v623
        %v625 = vrot.slane %v624, 1
        %v626 = vadd.f32 %v624, %v625
        %v627 = vadd.f32 %v589, %v626
        %628 = vst [vmem:[%s245] sm:$0xff] %v627
      $region36: #{_conv_block_forward.2} parent=27 // pred_fallthru
        _
      %p629 = scmp.gt.s32.totalorder %s560, 128
      // Predicated region
      $region37: #{_conv_block_forward.2} parent=27 // pred_check
        %p630 = pneg %p629
      $region38: #{_conv_block_forward.2} parent=27 // pred_check_branch
        %632 = sbr.rel (%p630) target = $region40
      $region39: #{_conv_block_forward.2} parent=27 // pred_region
        %s633 = smul.u32 %s558, 128
        %v634 = vlaneseq
        %v635 = vshrl.u32 %v634, 7
        %v636 = vadd.s32 %v635, 8
        %v637 = vadd.s32 %v635, 16
        %v638 = vadd.s32 %v635, 24
        %v639 = vadd.s32 %v635, 32
        %v640 = vadd.s32 %v635, 40
        %v641 = vadd.s32 %v635, 48
        %v642 = vadd.s32 %v635, 56
        %v643 = vadd.s32 %v635, 64
        %v644 = vadd.s32 %v635, 72
        %v645 = vadd.s32 %v635, 80
        %v646 = vadd.s32 %v635, 88
        %v647 = vadd.s32 %v635, 96
        %v648 = vadd.s32 %v635, 104
        %v649 = vadd.s32 %v635, 112
        %v650 = vadd.s32 %v635, 120
        %v651 = vstv %s633
        %v652 = vadd.s32 %v651, %v635
        %v653 = vadd.s32 %v651, %v636
        %v654 = vadd.s32 %v651, %v637
        %v655 = vadd.s32 %v651, %v638
        %v656 = vadd.s32 %v651, %v639
        %v657 = vadd.s32 %v651, %v640
        %v658 = vadd.s32 %v651, %v641
        %v659 = vadd.s32 %v651, %v642
        %v660 = vadd.s32 %v651, %v643
        %v661 = vadd.s32 %v651, %v644
        %v662 = vadd.s32 %v651, %v645
        %v663 = vadd.s32 %v651, %v646
        %v664 = vadd.s32 %v651, %v647
        %v665 = vadd.s32 %v651, %v648
        %v666 = vadd.s32 %v651, %v649
        %v667 = vadd.s32 %v651, %v650
        %vm668 = vcmp.lt.s32.totalorder %v652, 128
        %vm669 = vcmp.lt.s32.totalorder %v653, 128
        %vm670 = vcmp.lt.s32.totalorder %v654, 128
        %vm671 = vcmp.lt.s32.totalorder %v655, 128
        %vm672 = vcmp.lt.s32.totalorder %v656, 128
        %vm673 = vcmp.lt.s32.totalorder %v657, 128
        %vm674 = vcmp.lt.s32.totalorder %v658, 128
        %vm675 = vcmp.lt.s32.totalorder %v659, 128
        %vm676 = vcmp.lt.s32.totalorder %v660, 128
        %vm677 = vcmp.lt.s32.totalorder %v661, 128
        %vm678 = vcmp.lt.s32.totalorder %v662, 128
        %vm679 = vcmp.lt.s32.totalorder %v663, 128
        %vm680 = vcmp.lt.s32.totalorder %v664, 128
        %vm681 = vcmp.lt.s32.totalorder %v665, 128
        %vm682 = vcmp.lt.s32.totalorder %v666, 128
        %vm683 = vcmp.lt.s32.totalorder %v667, 128
        %v684 = vsel %vm668, %v416, 0.0
        %v685 = vsel %vm669, %v419, 0.0
        %v686 = vsel %vm670, %v424, 0.0
        %v687 = vsel %vm671, %v427, 0.0
        %v688 = vsel %vm672, %v432, 0.0
        %v689 = vsel %vm673, %v435, 0.0
        %v690 = vsel %vm674, %v440, 0.0
        %v691 = vsel %vm675, %v443, 0.0
        %v692 = vsel %vm676, %v448, 0.0
        %v693 = vsel %vm677, %v451, 0.0
        %v694 = vsel %vm678, %v456, 0.0
        %v695 = vsel %vm679, %v459, 0.0
        %v696 = vsel %vm680, %v464, 0.0
        %v697 = vsel %vm681, %v467, 0.0
        %v698 = vsel %vm682, %v472, 0.0
        %v699 = vsel %vm683, %v475, 0.0
        %v700 = vld [vmem:[%s241] sm:$0xff]
        %v701 = vadd.f32 %v684, %v685
        %v702 = vadd.f32 %v701, %v686
        %v703 = vadd.f32 %v702, %v687
        %v704 = vadd.f32 %v703, %v688
        %v705 = vadd.f32 %v704, %v689
        %v706 = vadd.f32 %v705, %v690
        %v707 = vadd.f32 %v706, %v691
        %v708 = vadd.f32 %v707, %v692
        %v709 = vadd.f32 %v708, %v693
        %v710 = vadd.f32 %v709, %v694
        %v711 = vadd.f32 %v710, %v695
        %v712 = vadd.f32 %v711, %v696
        %v713 = vadd.f32 %v712, %v697
        %v714 = vadd.f32 %v713, %v698
        %v715 = vadd.f32 %v714, %v699
        %v716 = vrot.slane %v715, 4
        %v717 = vadd.f32 %v715, %v716
        %v718 = vrot.slane %v717, 2
        %v719 = vadd.f32 %v717, %v718
        %v720 = vrot.slane %v719, 1
        %v721 = vadd.f32 %v719, %v720
        %v722 = vadd.f32 %v700, %v721
        %723 = vst [vmem:[%s241] sm:$0xff] %v722
        %v724 = vld [vmem:[%s245] sm:$0xff]
        %v725 = vmul.f32 %v684, %v684
        %v726 = vmul.f32 %v685, %v685
        %v727 = vmul.f32 %v686, %v686
        %v728 = vmul.f32 %v687, %v687
        %v729 = vmul.f32 %v688, %v688
        %v730 = vmul.f32 %v689, %v689
        %v731 = vmul.f32 %v690, %v690
        %v732 = vmul.f32 %v691, %v691
        %v733 = vmul.f32 %v692, %v692
        %v734 = vmul.f32 %v693, %v693
        %v735 = vmul.f32 %v694, %v694
        %v736 = vmul.f32 %v695, %v695
        %v737 = vmul.f32 %v696, %v696
        %v738 = vmul.f32 %v697, %v697
        %v739 = vmul.f32 %v698, %v698
        %v740 = vmul.f32 %v699, %v699
        %v741 = vadd.f32 %v725, %v726
        %v742 = vadd.f32 %v741, %v727
        %v743 = vadd.f32 %v742, %v728
        %v744 = vadd.f32 %v743, %v729
        %v745 = vadd.f32 %v744, %v730
        %v746 = vadd.f32 %v745, %v731
        %v747 = vadd.f32 %v746, %v732
        %v748 = vadd.f32 %v747, %v733
        %v749 = vadd.f32 %v748, %v734
        %v750 = vadd.f32 %v749, %v735
        %v751 = vadd.f32 %v750, %v736
        %v752 = vadd.f32 %v751, %v737
        %v753 = vadd.f32 %v752, %v738
        %v754 = vadd.f32 %v753, %v739
        %v755 = vadd.f32 %v754, %v740
        %v756 = vrot.slane %v755, 4
        %v757 = vadd.f32 %v755, %v756
        %v758 = vrot.slane %v757, 2
        %v759 = vadd.f32 %v757, %v758
        %v760 = vrot.slane %v759, 1
        %v761 = vadd.f32 %v759, %v760
        %v762 = vadd.f32 %v724, %v761
        %763 = vst [vmem:[%s245] sm:$0xff] %v762
      $region40: #{_conv_block_forward.2} parent=27 // pred_fallthru
        _
      %s764 = sadd.s32 %s20, %s21
      %s765 = smul.u32 16, %s764
      %p766 = scmp.lt.s32.totalorder %s765, 31
      %s767 = scalar_select %p766, %s765, 31
      %s768 = smul.addr %s767, 4
      %s769 = scalar_lea.vmem %s2, %s768
      %p770 = scmp.lt.s32.totalorder %s20, 1
      %s771 = scalar_select %p770, %s20, 1
      %s772 = smul.addr %s771, 8
      %s773 = scalar_lea.vmem %s3, %s772
      %p774 = scmp.lt.s32.totalorder %s20, 1
      %s775 = scalar_select %p774, %s20, 1
      %s776 = smul.addr %s775, 8
      %s777 = scalar_lea.vmem %s4, %s776
      // Predicated region
      $region41: #{_conv_block_forward.2} parent=27 // pred_check
        %p778 = pneg %p97
      $region42: #{_conv_block_forward.2} parent=27 // pred_check_branch
        %780 = sbr.rel (%p778) target = $region44
      $region43: #{_conv_block_forward.2} parent=27 // pred_region
        %s781 = sadd.s32 %s20, %s21
        %s782 = smul.u32 16, %s781
      $region44: #{_conv_block_forward.2} parent=27 // pred_fallthru
        _
      // Predicated region
      $region45: #{_conv_block_forward.2} parent=27 // pred_check
        %p783 = pneg %p123
      $region46: #{_conv_block_forward.2} parent=27 // pred_check_branch
        %785 = sbr.rel (%p783) target = $region48
      $region47: #{_conv_block_forward.2} parent=27 // pred_region
        _
      $region48: #{_conv_block_forward.2} parent=27 // pred_fallthru
        _
      // Predicated region
      $region49: #{_conv_block_forward.2} parent=27 // pred_check
        %p786 = pneg %p149
      $region50: #{_conv_block_forward.2} parent=27 // pred_check_branch
        %788 = sbr.rel (%p786) target = $region52
      $region51: #{_conv_block_forward.2} parent=27 // pred_region
        _
      $region52: #{_conv_block_forward.2} parent=27 // pred_fallthru
        _
    $region28: #{_conv_block_forward.2} parent=5 // pred_fallthru
      _
    %p789 = scmp.le.s32.totalorder 2, %s11
    // Predicated region
    $region53: #{_conv_block_forward.2} parent=5 // pred_check
      %p790 = pneg %p789
    $region54: #{_conv_block_forward.2} parent=5 // pred_check_branch
      %792 = sbr.rel (%p790) target = $region56
    $region55: #{_conv_block_forward.2} parent=5 // pred_region
      %s793 = ssub.s32 %s11, 2
      // Predicated region
      $region57: #{_conv_block_forward.2} parent=55 // pred_check
        %p794 = pneg %p103
      $region58: #{_conv_block_forward.2} parent=55 // pred_check_branch
        %796 = sbr.rel (%p794) target = $region60
      $region59: #{_conv_block_forward.2} parent=55 // pred_region
        %s797 = sadd.s32 %s22, %s23
        %s798 = smul.u32 16, %s797
        %p799 = scmp.lt.s32.totalorder %s798, 31
        %s800 = scalar_select %p799, %s798, 31
        %s801 = smul.addr %s800, 4
        %s802 = scalar_lea.vmem %s2, %s801
      $region60: #{_conv_block_forward.2} parent=55 // pred_fallthru
        _
      // Predicated region
      $region61: #{_conv_block_forward.2} parent=55 // pred_check
        %p803 = pneg %p129
      $region62: #{_conv_block_forward.2} parent=55 // pred_check_branch
        %805 = sbr.rel (%p803) target = $region64
      $region63: #{_conv_block_forward.2} parent=55 // pred_region
        %p806 = scmp.lt.s32.totalorder %s22, 1
        %s807 = scalar_select %p806, %s22, 1
        %s808 = smul.addr %s807, 8
        %s809 = scalar_lea.vmem %s3, %s808
      $region64: #{_conv_block_forward.2} parent=55 // pred_fallthru
        _
      // Predicated region
      $region65: #{_conv_block_forward.2} parent=55 // pred_check
        %p810 = pneg %p155
      $region66: #{_conv_block_forward.2} parent=55 // pred_check_branch
        %812 = sbr.rel (%p810) target = $region68
      $region67: #{_conv_block_forward.2} parent=55 // pred_region
        %p813 = scmp.lt.s32.totalorder %s22, 1
        %s814 = scalar_select %p813, %s22, 1
        %s815 = smul.addr %s814, 8
        %s816 = scalar_lea.vmem %s4, %s815
      $region68: #{_conv_block_forward.2} parent=55 // pred_fallthru
        _
    $region56: #{_conv_block_forward.2} parent=5 // pred_fallthru
      _
  $region6: #{_conv_block_forward.2} parent=0 // loop_footer
    %s15 = sadd.s32 1, %s11
  $region7: #{_conv_block_forward.2} parent=0 // loop_footer_branch
    %10 = sbr.rel target = $region3
  $region8: #{_conv_block_forward.2} parent=0 // loop_exit
    _

// kernel: _conv_block_forward.3
$region0: #{_conv_block_forward.3}
  #allocation0 [shape = 'u32[]', space=smem, size = 0x4, offset = 0x4, fixed_abs, tag = 'smem constant byte address 0x4 - core index']
  #allocation1 [shape = 'u32[144,128]{1,0:T(1,128)}', space=vmem, size = 0x12000, scoped, tag = 'internal scratch']
  %s0 = inlined_call_operand.vmem [shape: bf16[256,128], index: 0, kind: input, shape index: {}]
  %s1 = inlined_call_operand.vmem [shape: f32[1,128], index: 1, kind: input, shape index: {}]
  %s2 = inlined_call_operand.vmem [shape: f32[1,128], index: 2, kind: input, shape index: {}]
  %s3 = inlined_call_operand.vmem [shape: f32[256,128], index: 3, kind: output, shape index: {}]
  %s4 = sld [smem:[#allocation0]]
  $region22: #{_conv_block_forward.3} parent=0
    _
  %s6 = ssub.s32 1, %s4
  %s7 = scalar_select 0, %s6, %s4
  // Predicated region
  $region2: #{_conv_block_forward.3} parent=0 // pred_check
    _
  $region3: #{_conv_block_forward.3} parent=0 // pred_check_branch
    %9 = sbr.rel (0) target = $region5
  $region4: #{_conv_block_forward.3} parent=0 // pred_region
    _
  $region5: #{_conv_block_forward.3} parent=0 // pred_fallthru
    _
  // Predicated region
  $region6: #{_conv_block_forward.3} parent=0 // pred_check
    _
  $region7: #{_conv_block_forward.3} parent=0 // pred_check_branch
    %11 = sbr.rel (0) target = $region9
  $region8: #{_conv_block_forward.3} parent=0 // pred_region
    _
  $region9: #{_conv_block_forward.3} parent=0 // pred_fallthru
    _
  // Predicated region
  $region10: #{_conv_block_forward.3} parent=0 // pred_check
    _
  $region11: #{_conv_block_forward.3} parent=0 // pred_check_branch
    %13 = sbr.rel (0) target = $region13
  $region12: #{_conv_block_forward.3} parent=0 // pred_region
    _
  $region13: #{_conv_block_forward.3} parent=0 // pred_fallthru
    _
  %v14 = vld [vmem:[%s0] sm:$0xf]
  %v15 = vld [vmem:[%s0 + $0x4] sm:$0xf]
  %v16 = vld [vmem:[%s0 + $0x8] sm:$0xf]
  %v17 = vld [vmem:[%s0 + $0xc] sm:$0xf]
  %v18 = vld [vmem:[%s0 + $0x10] sm:$0xf]
  %v19 = vld [vmem:[%s0 + $0x14] sm:$0xf]
  %v20 = vld [vmem:[%s0 + $0x18] sm:$0xf]
  %v21 = vld [vmem:[%s0 + $0x1c] sm:$0xf]
  %v22 = vld [vmem:[%s0 + $0x20] sm:$0xf]
  %v23 = vld [vmem:[%s0 + $0x24] sm:$0xf]
  %v24 = vld [vmem:[%s0 + $0x28] sm:$0xf]
  %v25 = vld [vmem:[%s0 + $0x2c] sm:$0xf]
  %v26 = vld [vmem:[%s0 + $0x30] sm:$0xf]
  %v27 = vld [vmem:[%s0 + $0x34] sm:$0xf]
  %v28 = vld [vmem:[%s0 + $0x38] sm:$0xf]
  %v29 = vld [vmem:[%s0 + $0x3c] sm:$0xf]
  %v30 = vld [vmem:[%s0 + $0x40] sm:$0xf]
  %v31 = vld [vmem:[%s0 + $0x44] sm:$0xf]
  %v32 = vld [vmem:[%s0 + $0x48] sm:$0xf]
  %v33 = vld [vmem:[%s0 + $0x4c] sm:$0xf]
  %v34 = vld [vmem:[%s0 + $0x50] sm:$0xf]
  %v35 = vld [vmem:[%s0 + $0x54] sm:$0xf]
  %v36 = vld [vmem:[%s0 + $0x58] sm:$0xf]
  %v37 = vld [vmem:[%s0 + $0x5c] sm:$0xf]
  %v38 = vld [vmem:[%s0 + $0x60] sm:$0xf]
  %v39 = vld [vmem:[%s0 + $0x64] sm:$0xf]
  %v40 = vld [vmem:[%s0 + $0x68] sm:$0xf]
  %v41 = vld [vmem:[%s0 + $0x6c] sm:$0xf]
  %v42 = vld [vmem:[%s0 + $0x70] sm:$0xf]
  %v43 = vld [vmem:[%s0 + $0x74] sm:$0xf]
  %v44 = vld [vmem:[%s0 + $0x78] sm:$0xf]
  %v45 = vld [vmem:[%s0 + $0x7c] sm:$0xf]
  %v46 = vunpack.c.l.bf16 %v14
  %v47 = vunpack.c.l.bf16 %v15
  %v48 = vunpack.c.l.bf16 %v16
  %v49 = vunpack.c.l.bf16 %v17
  %v50 = vunpack.c.l.bf16 %v18
  %v51 = vunpack.c.l.bf16 %v19
  %v52 = vunpack.c.l.bf16 %v20
  %v53 = vunpack.c.l.bf16 %v21
  %v54 = vunpack.c.l.bf16 %v22
  %v55 = vunpack.c.l.bf16 %v23
  %v56 = vunpack.c.l.bf16 %v24
  %v57 = vunpack.c.l.bf16 %v25
  %v58 = vunpack.c.l.bf16 %v26
  %v59 = vunpack.c.l.bf16 %v27
  %v60 = vunpack.c.l.bf16 %v28
  %v61 = vunpack.c.l.bf16 %v29
  %v62 = vunpack.c.l.bf16 %v30
  %v63 = vunpack.c.l.bf16 %v31
  %v64 = vunpack.c.l.bf16 %v32
  %v65 = vunpack.c.l.bf16 %v33
  %v66 = vunpack.c.l.bf16 %v34
  %v67 = vunpack.c.l.bf16 %v35
  %v68 = vunpack.c.l.bf16 %v36
  %v69 = vunpack.c.l.bf16 %v37
  %v70 = vunpack.c.l.bf16 %v38
  %v71 = vunpack.c.l.bf16 %v39
  %v72 = vunpack.c.l.bf16 %v40
  %v73 = vunpack.c.l.bf16 %v41
  %v74 = vunpack.c.l.bf16 %v42
  %v75 = vunpack.c.l.bf16 %v43
  %v76 = vunpack.c.l.bf16 %v44
  %v77 = vunpack.c.l.bf16 %v45
  %v78 = vld [vmem:[%s1] sm:$0x1]
  %v80 = vlaneseq
  %v81 = vshrl.u32 %v80, 7
  %v82 = vsub.s32 0, %v81
  %v83 = vrot.slane %v78, %v82
  %v85 = vmul.f32 %v46, %v83
  %v86 = vmul.f32 %v47, %v83
  %v87 = vmul.f32 %v48, %v83
  %v88 = vmul.f32 %v49, %v83
  %v89 = vmul.f32 %v50, %v83
  %v90 = vmul.f32 %v51, %v83
  %v91 = vmul.f32 %v52, %v83
  %v92 = vmul.f32 %v53, %v83
  %v93 = vmul.f32 %v54, %v83
  %v94 = vmul.f32 %v55, %v83
  %v95 = vmul.f32 %v56, %v83
  %v96 = vmul.f32 %v57, %v83
  %v97 = vmul.f32 %v58, %v83
  %v98 = vmul.f32 %v59, %v83
  %v99 = vmul.f32 %v60, %v83
  %v100 = vmul.f32 %v61, %v83
  %v101 = vmul.f32 %v62, %v83
  %v102 = vmul.f32 %v63, %v83
  %v103 = vmul.f32 %v64, %v83
  %v104 = vmul.f32 %v65, %v83
  %v105 = vmul.f32 %v66, %v83
  %v106 = vmul.f32 %v67, %v83
  %v107 = vmul.f32 %v68, %v83
  %v108 = vmul.f32 %v69, %v83
  %v109 = vmul.f32 %v70, %v83
  %v110 = vmul.f32 %v71, %v83
  %v111 = vmul.f32 %v72, %v83
  %v112 = vmul.f32 %v73, %v83
  %v113 = vmul.f32 %v74, %v83
  %v114 = vmul.f32 %v75, %v83
  %v115 = vmul.f32 %v76, %v83
  %v116 = vmul.f32 %v77, %v83
  %v117 = vld [vmem:[%s2] sm:$0x1]
  %v119 = vlaneseq
  %v120 = vshrl.u32 %v119, 7
  %v121 = vsub.s32 0, %v120
  %v122 = vrot.slane %v117, %v121
  %v124 = vadd.f32 %v85, %v122
  %v125 = vadd.f32 %v86, %v122
  %v126 = vadd.f32 %v87, %v122
  %v127 = vadd.f32 %v88, %v122
  %v128 = vadd.f32 %v89, %v122
  %v129 = vadd.f32 %v90, %v122
  %v130 = vadd.f32 %v91, %v122
  %v131 = vadd.f32 %v92, %v122
  %v132 = vadd.f32 %v93, %v122
  %v133 = vadd.f32 %v94, %v122
  %v134 = vadd.f32 %v95, %v122
  %v135 = vadd.f32 %v96, %v122
  %v136 = vadd.f32 %v97, %v122
  %v137 = vadd.f32 %v98, %v122
  %v138 = vadd.f32 %v99, %v122
  %v139 = vadd.f32 %v100, %v122
  %v140 = vadd.f32 %v101, %v122
  %v141 = vadd.f32 %v102, %v122
  %v142 = vadd.f32 %v103, %v122
  %v143 = vadd.f32 %v104, %v122
  %v144 = vadd.f32 %v105, %v122
  %v145 = vadd.f32 %v106, %v122
  %v146 = vadd.f32 %v107, %v122
  %v147 = vadd.f32 %v108, %v122
  %v148 = vadd.f32 %v109, %v122
  %v149 = vadd.f32 %v110, %v122
  %v150 = vadd.f32 %v111, %v122
  %v151 = vadd.f32 %v112, %v122
  %v152 = vadd.f32 %v113, %v122
  %v153 = vadd.f32 %v114, %v122
  %v154 = vadd.f32 %v115, %v122
  %v155 = vadd.f32 %v116, %v122
  %156 = vst [vmem:[%s3] sm:$0xff] %v124
  %157 = vst [vmem:[%s3 + $0x8] sm:$0xff] %v125
  %158 = vst [vmem:[%s3 + $0x10] sm:$0xff] %v126
  %159 = vst [vmem:[%s3 + $0x18] sm:$0xff] %v127
  %160 = vst [vmem:[%s3 + $0x20] sm:$0xff] %v128
  %161 = vst [vmem:[%s3 + $0x28] sm:$0xff] %v129
  %162 = vst [vmem:[%s3 + $0x30] sm:$0xff] %v130
  %163 = vst [vmem:[%s3 + $0x38] sm:$0xff] %v131
  %164 = vst [vmem:[%s3 + $0x40] sm:$0xff] %v132
  %165 = vst [vmem:[%s3 + $0x48] sm:$0xff] %v133
  %166 = vst [vmem:[%s3 + $0x50] sm:$0xff] %v134
  %167 = vst [vmem:[%s3 + $0x58] sm:$0xff] %v135
  %168 = vst [vmem:[%s3 + $0x60] sm:$0xff] %v136
  %169 = vst [vmem:[%s3 + $0x68] sm:$0xff] %v137
  %170 = vst [vmem:[%s3 + $0x70] sm:$0xff] %v138
  %171 = vst [vmem:[%s3 + $0x78] sm:$0xff] %v139
  %172 = vst [vmem:[%s3 + $0x80] sm:$0xff] %v140
  %173 = vst [vmem:[%s3 + $0x88] sm:$0xff] %v141
  %174 = vst [vmem:[%s3 + $0x90] sm:$0xff] %v142
  %175 = vst [vmem:[%s3 + $0x98] sm:$0xff] %v143
  %176 = vst [vmem:[%s3 + $0xa0] sm:$0xff] %v144
  %177 = vst [vmem:[%s3 + $0xa8] sm:$0xff] %v145
  %178 = vst [vmem:[%s3 + $0xb0] sm:$0xff] %v146
  %179 = vst [vmem:[%s3 + $0xb8] sm:$0xff] %v147
  %180 = vst [vmem:[%s3 + $0xc0] sm:$0xff] %v148
  %181 = vst [vmem:[%s3 + $0xc8] sm:$0xff] %v149
  %182 = vst [vmem:[%s3 + $0xd0] sm:$0xff] %v150
  %183 = vst [vmem:[%s3 + $0xd8] sm:$0xff] %v151
  %184 = vst [vmem:[%s3 + $0xe0] sm:$0xff] %v152
  %185 = vst [vmem:[%s3 + $0xe8] sm:$0xff] %v153
  %186 = vst [vmem:[%s3 + $0xf0] sm:$0xff] %v154
  %187 = vst [vmem:[%s3 + $0xf8] sm:$0xff] %v155
  // Predicated region
  $region14: #{_conv_block_forward.3} parent=0 // pred_check
    _
  $region15: #{_conv_block_forward.3} parent=0 // pred_check_branch
    %189 = sbr.rel (0) target = $region17
  $region16: #{_conv_block_forward.3} parent=0 // pred_region
    _
  $region17: #{_conv_block_forward.3} parent=0 // pred_fallthru
    _
  // Predicated region
  $region18: #{_conv_block_forward.3} parent=0 // pred_check
    _
  $region19: #{_conv_block_forward.3} parent=0 // pred_check_branch
    %191 = sbr.rel (0) target = $region21
  $region20: #{_conv_block_forward.3} parent=0 // pred_region
    _
  $region21: #{_conv_block_forward.3} parent=0 // pred_fallthru
    _

</llo_original>
